<compile_context>
chip_gen: v7x
topology: tpu7x:2x2x1
jax: 0.10.0
libtpu: 0.0.40
codegen_flags: <defaults>
</compile_context>

<pallas_src>
import math

import jax
import jax.numpy as jnp
from jax import lax
from jax.experimental import pallas as pl
from jax.experimental.pallas import tpu as pltpu


def sdpa_kernel(scale_ref, q_ref, k_ref, v_ref, o_ref):
    # scale_ref: SMEM (1,)   -- the inv_scale_factor parameter
    # q_ref: [S, Dq] f32     -- query parameter (batch==1, shared)
    # k_ref: [S, Dk] f32     -- key parameter   (batch==1, shared)
    # v_ref: [S, Nblk] f32   -- lane-dense value slab (batch merged into lanes)
    # o_ref: [S, Nblk] f32

    # Fold the scale into Q: one scalar reciprocal + S*Dq multiplies instead
    # of S*S divides sitting between the two matmuls.
    inv = 1.0 / scale_ref[0]
    q = q_ref[...] * inv                         # [S, Dq]
    k = k_ref[...]                               # [S, Dk]

    # qk = (q / c) @ k^T, contracting the last dim of both operands directly
    # (no materialized transpose -> no XLU vxpose on the critical path).
    # Kept in f32: it is tiny and its result feeds exp().
    qk = lax.dot_general(
        q, k,
        dimension_numbers=(((1,), (1,)), ((), ())),
        preferred_element_type=jnp.float32,
    )                                            # [S, S]

    # Numerically-stable softmax along the last dim (VPU + XLU + EUP).
    # NOTE: recomputed per lane-block; S=32 makes this negligible and it keeps
    # each grid step fully independent ("parallel" across TensorCores).
    m = jnp.max(qk, axis=-1, keepdims=True)
    p = jnp.exp(qk - m)
    denom = jnp.sum(p, axis=-1, keepdims=True)
    # approx=True -> EUP vrcp slot, effectively free next to VPU/MXU work.
    softmax_qk = p * pl.reciprocal(denom, approx=True)

    # TODO(synk): training-mode dropout mask (pltpu.prng_*) not implemented;
    # eval-mode dropout is the identity, matching PyTorch inference semantics.
    dropout_qk = softmax_qk

    # output = softmax @ value_slab -> [S, Nblk] on the bf16 MXU path with f32
    # accumulation.  P in [0,1] is well-conditioned in bf16.
    o_ref[...] = jnp.dot(
        dropout_qk.astype(jnp.bfloat16),
        v_ref[...].astype(jnp.bfloat16),
        preferred_element_type=jnp.float32,
    ).astype(o_ref.dtype)


def sdp_attention(query, key, inv_scale, value):
    """query [1,S,Dq], key [1,S,Dk], inv_scale [1], value [B,S,Dv] -> [B,S,Dv]."""
    assert query.shape[0] == 1 and key.shape[0] == 1, "parameters have batch 1"
    _, S, Dq = query.shape
    Dk = key.shape[-1]
    assert Dq == Dk, "query/key feature dims must match for qk^T"
    B, Sv, Dv = value.shape
    assert Sv == S

    # Merge batch into the lane (last) dim so every vreg / DMA / store is
    # lane-dense:  value [B,S,Dv] -> [S, B*Dv].  Pure layout plumbing (XLA).
    N = B * Dv
    v2 = jnp.transpose(value, (1, 0, 2)).reshape(S, N)
    q2 = query[0]                                # [S, Dq]
    k2 = key[0]                                  # [S, Dk]

    # Lane-dense blocking of the merged dim.  128-wide blocks give a grid of
    # length >= 2 whenever B*Dv >= 256 (both v7x TensorCores busy); otherwise
    # fall back to the full extent (always legal).
    n_blk = 128 if (N % 128 == 0) else N
    grid = (N // n_blk,)

    out2 = pl.pallas_call(
        sdpa_kernel,
        out_shape=jax.ShapeDtypeStruct((S, N), jnp.float32),
        grid=grid,
        in_specs=[
            # (1,) scalar parameter lives in SMEM for every grid step
            pl.BlockSpec(memory_space=pltpu.MemorySpace.SMEM),
            # query/key are shared by every lane-block
            pl.BlockSpec((S, Dq), lambda n: (0, 0)),
            pl.BlockSpec((S, Dk), lambda n: (0, 0)),
            # value slab: tile the merged lane dim
            pl.BlockSpec((S, n_blk), lambda n: (0, n)),
        ],
        out_specs=pl.BlockSpec((S, n_blk), lambda n: (0, n)),
        compiler_params=pltpu.CompilerParams(
            # lane-blocks are independent -> shards across v7x's 2 TensorCores
            dimension_semantics=("parallel",),
            # tiles here are ~10s of KB; explicit limit keeps the same config
            # safe on v7x (64 MiB physical VMEM) and v5e/v6e (128 MiB).
            vmem_limit_bytes=32 * 1024 * 1024,
        ),
    )(inv_scale, q2, k2, v2)

    # [S, B*Dv] -> [B, S, Dv]
    return jnp.transpose(out2.reshape(S, B, Dv), (1, 0, 2))


def reference(query, key, inv_scale, value):
    """Pure-JAX f32 reference with PyTorch-module semantics (eval-mode dropout)."""
    qk = jnp.matmul(query, jnp.swapaxes(key, -1, -2),
                    precision=jax.lax.Precision.HIGHEST)        # [1,S,S]
    scaled = qk / inv_scale[0]
    sm = jax.nn.softmax(scaled, axis=-1)                        # [1,S,S]
    return jnp.matmul(sm, value,
                      precision=jax.lax.Precision.HIGHEST)      # [B,S,Dv]


if __name__ == "__main__":
    seq_len = 32
    feat = 16       # query_feature == key_feature (required for a valid matmul)
    d_v = 32
    batch = 8       # value batch; merged into lanes -> 8 * 32 = 256 lane-dense

    key0 = jax.random.PRNGKey(0)
    k_q, k_k, k_v = jax.random.split(key0, 3)

    # deterministic "parameters" (mirrors torch.randn init in __init__)
    query = jax.random.normal(k_q, (1, seq_len, feat), dtype=jnp.float32)
    key_p = jax.random.normal(k_k, (1, seq_len, feat), dtype=jnp.float32)
    # deterministic, well-conditioned divisor (canonical sqrt(d) attention
    # scale) instead of a random near-zero value that would blow up logits.
    inv_scale = jnp.full((1,), math.sqrt(feat), dtype=jnp.float32)

    # forward inputs
    value = jax.random.normal(k_v, (batch, seq_len, d_v), dtype=jnp.float32)
    dropout_p_ = 0.1  # unused by the forward pass (matches the PyTorch module)

    out = sdp_attention(query, key_p, inv_scale, value)
    out = jax.block_until_ready(out)

    ref = reference(query, key_p, inv_scale, value)
    assert out.shape == (batch, seq_len, d_v)
    # tolerance relaxed: the P @ V matmul runs on the bf16 MXU path (f32
    # accumulation) and the scale is folded into Q, which changes rounding
    # order relative to the f32 divide-after-matmul reference.
    assert jnp.allclose(out, ref, atol=5e-2, rtol=5e-2), float(
        jnp.max(jnp.abs(out - ref)))

    print("KERNEL_OK")
</pallas_src>

<mosaic_0001>
module attributes {stable_mosaic.version = 11 : i64} {
  func.func @sdpa_kernel(%arg0: i32, %arg1: memref<1xf32, #tpu.memory_space<smem>>, %arg2: memref<32x16xf32, #tpu.memory_space<vmem>>, %arg3: memref<32x16xf32, #tpu.memory_space<vmem>>, %arg4: memref<32x128xf32, #tpu.memory_space<vmem>>, %arg5: memref<32x128xf32, #tpu.memory_space<vmem>>) attributes {dimension_semantics = [#tpu.dimension_semantics<parallel>], iteration_bounds = array<i64: 2>, scalar_prefetch = 0 : i64, scratch_operands = 0 : i64, tpu.core_type = #tpu.core_type<tc>, window_params = [{transform_indices = @transform_0, window_bounds = array<i64: 1>}, {pipeline_mode = #tpu.pipeline_mode<synchronous>, transform_indices = @transform_1, window_bounds = array<i64: 32, 16>}, {pipeline_mode = #tpu.pipeline_mode<synchronous>, transform_indices = @transform_2, window_bounds = array<i64: 32, 16>}, {transform_indices = @transform_3, window_bounds = array<i64: 32, 128>}, {transform_indices = @transform_4, window_bounds = array<i64: 32, 128>}]} {
    %c0 = arith.constant 0 : index
    %0 = memref.load %arg1[%c0] : memref<1xf32, #tpu.memory_space<smem>>
    %cst = arith.constant 1.000000e+00 : f32
    %1 = arith.divf %cst, %0 : f32
    %c0_0 = arith.constant 0 : index
    %c0_1 = arith.constant 0 : index
    %2 = vector.load %arg2[%c0_0, %c0_1] : memref<32x16xf32, #tpu.memory_space<vmem>>, vector<32x16xf32>
    %3 = vector.broadcast %1 : f32 to vector<32x16xf32>
    %4 = arith.mulf %2, %3 : vector<32x16xf32>
    %c0_2 = arith.constant 0 : index
    %c0_3 = arith.constant 0 : index
    %5 = vector.load %arg3[%c0_2, %c0_3] : memref<32x16xf32, #tpu.memory_space<vmem>>, vector<32x16xf32>
    %cst_4 = arith.constant dense<0.000000e+00> : vector<32x32xf32>
    %6 = tpu.matmul %4, %5, %cst_4 {dimension_numbers = #tpu.dot_dimension_numbers<[1], [1], [0], [0], [0, 0, 1, 0], [], []>} : vector<32x16xf32>, vector<32x16xf32>, vector<32x32xf32> -> vector<32x32xf32>
    %cst_5 = arith.constant dense<0xFF800000> : vector<32xf32>
    %7 = vector.multi_reduction <maximumf>, %6, %cst_5 [1] : vector<32x32xf32> to vector<32xf32>
    %8 = vector.shape_cast %7 : vector<32xf32> to vector<32x1xf32>
    %9 = vector.broadcast %8 : vector<32x1xf32> to vector<32x32xf32>
    %10 = arith.subf %6, %9 : vector<32x32xf32>
    %11 = math.exp %10 : vector<32x32xf32>
    %cst_6 = arith.constant dense<0.000000e+00> : vector<32xf32>
    %12 = vector.multi_reduction <add>, %11, %cst_6 [1] : vector<32x32xf32> to vector<32xf32>
    %13 = vector.shape_cast %12 : vector<32xf32> to vector<32x1xf32>
    %14 = tpu.reciprocal %13 {approx = true} : vector<32x1xf32> -> vector<32x1xf32>
    %15 = vector.broadcast %14 : vector<32x1xf32> to vector<32x32xf32>
    %16 = arith.mulf %11, %15 : vector<32x32xf32>
    %17 = arith.truncf %16 : vector<32x32xf32> to vector<32x32xbf16>
    %c0_7 = arith.constant 0 : index
    %c0_8 = arith.constant 0 : index
    %18 = vector.load %arg4[%c0_7, %c0_8] : memref<32x128xf32, #tpu.memory_space<vmem>>, vector<32x128xf32>
    %19 = arith.truncf %18 : vector<32x128xf32> to vector<32x128xbf16>
    %cst_9 = arith.constant dense<0.000000e+00> : vector<32x128xf32>
    %20 = tpu.matmul %17, %19, %cst_9 {dimension_numbers = #tpu.dot_dimension_numbers<[1], [0], [0], [1], [0, 0, 1, 1], [], []>} : vector<32x32xbf16>, vector<32x128xbf16>, vector<32x128xf32> -> vector<32x128xf32>
    %c0_10 = arith.constant 0 : index
    %c0_11 = arith.constant 0 : index
    %21 = vector.load %arg5[%c0_10, %c0_11] : memref<32x128xf32, #tpu.memory_space<vmem>>, vector<32x128xf32>
    tpu.vector_store %arg5[%c0_10, %c0_11], %20 {strides = array<i32>} : memref<32x128xf32, #tpu.memory_space<vmem>>, vector<32x128xf32>,
    return
  }
  func.func @transform_0(%arg0: i32) -> i32 {
    %c0_i32 = arith.constant 0 : i32
    %c0_i32_0 = arith.constant 0 : i32
    return %c0_i32 : i32
  }
  func.func @transform_1(%arg0: i32) -> (i32, i32) {
    %c0_i32 = arith.constant 0 : i32
    %c0_i32_0 = arith.constant 0 : i32
    %c0_i32_1 = arith.constant 0 : i32
    return %c0_i32, %c0_i32_0 : i32, i32
  }
  func.func @transform_2(%arg0: i32) -> (i32, i32) {
    %c0_i32 = arith.constant 0 : i32
    %c0_i32_0 = arith.constant 0 : i32
    %c0_i32_1 = arith.constant 0 : i32
    return %c0_i32, %c0_i32_0 : i32, i32
  }
  func.func @transform_3(%arg0: i32) -> (i32, i32) {
    %c0_i32 = arith.constant 0 : i32
    %c0_i32_0 = arith.constant 0 : i32
    return %c0_i32, %arg0 : i32, i32
  }
  func.func @transform_4(%arg0: i32) -> (i32, i32) {
    %c0_i32 = arith.constant 0 : i32
    %c0_i32_0 = arith.constant 0 : i32
    return %c0_i32, %arg0 : i32, i32
  }
}

</mosaic_0001>

<llo_original>
// kernel: tpu_custom_call.1
$region0: #{tpu_custom_call.1}
  #allocation0 [shape = 'u32[]', space=smem, size = 0x4, offset = 0x4, fixed_abs, tag = 'smem constant byte address 0x4 - core index']
  #allocation1 [shape = 'u32[144,128]{1,0:T(1,128)}', space=vmem, size = 0x12000, scoped, tag = 'internal scratch']
  #allocation2 [shape = 'f32[1]{0:T(128)S(6)}', space=smem, size = 0x200, scoped, tag = 'scoped memory for tpu_custom_call.1']
  %s0 = inlined_call_operand.<no memory space> [shape: f32[1], index: 0, kind: input, shape index: {}]
  %s1 = inlined_call_operand.vmem [shape: f32[32,16], index: 1, kind: input, shape index: {}]
  %s2 = inlined_call_operand.vmem [shape: f32[32,16], index: 2, kind: input, shape index: {}]
  %s3 = inlined_call_operand.vmem [shape: f32[32,256], index: 3, kind: input, shape index: {}]
  %s4 = inlined_call_operand.hbm [shape: f32[32,256], index: 4, kind: output, shape index: {}]
  %s5 = sld [smem:[#allocation0]]
  $region87: #{tpu_custom_call.1} parent=0
    _
  %s7 = ssub.s32 1, %s5
  %s8 = scalar_select 0, %s7, %s5
  %9 = sst [smem:[#allocation2]] %s0
  $region1: #{tpu_custom_call.1} parent=0
    #allocation3 [shape = 'u8[32768]{0}', space=vmem, size = 0x8000, scoped, tag = 'input window, operand 3']
    #allocation4 [shape = 'u8[32768]{0}', space=vmem, size = 0x8000, scoped, tag = 'output window, operand 0']
    #allocation5 [shape = 's32[2]{0}', space=sflag, size = 0x8, scoped, tag = 'scoped memory for tpu_custom_call.1']
    %10 = vsyncpa [#allocation5], 0
    %s11 = scalar_lea.sflag [#allocation5], 1
    %12 = vsyncpa %s11, 0
    loop: start=0, step=1, limit=4
    $region2: #{tpu_custom_call.1} parent=1 // loop_pre_header
      _
    $region3: #{tpu_custom_call.1} parent=1 // loop_header
      %s14 = sphi 0, %s18
      %p15 = scmp.ge.s32.totalorder %s14, 4
      %s22 = sphi 0, %s22
      %s24 = sphi 0, %s22
      %s25 = sphi 0, %s24
      %s39 = sphi 0, %s25
      %s43 = sphi 0, %s43
      %s45 = sphi 0, %s43
      %s46 = sphi 0, %s45
      %s60 = sphi 0, %s46
      %s64 = sphi 0, %s64
      %s66 = sphi 0, %s64
      %s67 = sphi 0, %s66
      %s81 = sphi 0, %s67
      %s87 = sphi 0, %s89
      %s90 = sphi 0, %s87
      %s91 = sphi 0, %s90
      %s107 = sphi 0, %s91
      %s113 = sphi 0, %s115
      %s116 = sphi 0, %s113
      %s117 = sphi 0, %s116
      %s133 = sphi 0, %s117
    $region4: #{tpu_custom_call.1} parent=1 // loop_header_branch
      %17 = sbr.rel (%p15) target = $region8
    $region5: #{tpu_custom_call.1} parent=1 // loop_body
      %s19 = ssub.s32 %s14, 1
      %s20 = ssub.s32 %s14, 2
      %s21 = sadd.s32 %s14, 1
      %s23 = sadd.s32 %s22, 1
      %p26 = scmp.eq.s32.totalorder %s14, 1
      %p27 = scmp.ne.s32.totalorder %s22, %s24
      %p28 = scmp.eq.s32.totalorder %s14, 0
      %p29 = por %p27, %p28
      %p30 = scmp.ne.s32.totalorder %s22, %s24
      %p31 = scmp.eq.s32.totalorder %s19, 1
      %p32 = por %p30, %p31
      %p33 = scmp.ne.s32.totalorder %s24, %s25
      %p34 = scmp.eq.s32.totalorder %s19, 0
      %p35 = por %p33, %p34
      %p36 = scmp.ne.s32.totalorder %s24, %s25
      %p37 = scmp.eq.s32.totalorder %s20, 1
      %p38 = por %p36, %p37
      %p40 = scmp.ne.s32.totalorder %s25, %s39
      %p41 = scmp.eq.s32.totalorder %s20, 0
      %p42 = por %p40, %p41
      %s44 = sadd.s32 %s43, 1
      %p47 = scmp.eq.s32.totalorder %s14, 1
      %p48 = scmp.ne.s32.totalorder %s43, %s45
      %p49 = scmp.eq.s32.totalorder %s14, 0
      %p50 = por %p48, %p49
      %p51 = scmp.ne.s32.totalorder %s43, %s45
      %p52 = scmp.eq.s32.totalorder %s19, 1
      %p53 = por %p51, %p52
      %p54 = scmp.ne.s32.totalorder %s45, %s46
      %p55 = scmp.eq.s32.totalorder %s19, 0
      %p56 = por %p54, %p55
      %p57 = scmp.ne.s32.totalorder %s45, %s46
      %p58 = scmp.eq.s32.totalorder %s20, 1
      %p59 = por %p57, %p58
      %p61 = scmp.ne.s32.totalorder %s46, %s60
      %p62 = scmp.eq.s32.totalorder %s20, 0
      %p63 = por %p61, %p62
      %s65 = sadd.s32 %s64, 1
      %p68 = scmp.eq.s32.totalorder %s14, 1
      %p69 = scmp.ne.s32.totalorder %s64, %s66
      %p70 = scmp.eq.s32.totalorder %s14, 0
      %p71 = por %p69, %p70
      %p72 = scmp.ne.s32.totalorder %s64, %s66
      %p73 = scmp.eq.s32.totalorder %s19, 1
      %p74 = por %p72, %p73
      %p75 = scmp.ne.s32.totalorder %s66, %s67
      %p76 = scmp.eq.s32.totalorder %s19, 0
      %p77 = por %p75, %p76
      %p78 = scmp.ne.s32.totalorder %s66, %s67
      %p79 = scmp.eq.s32.totalorder %s20, 1
      %p80 = por %p78, %p79
      %p82 = scmp.ne.s32.totalorder %s67, %s81
      %p83 = scmp.eq.s32.totalorder %s20, 0
      %p84 = por %p82, %p83
      %s85 = ssub.s32 %s14, %s21
      %p86 = scmp.eq.s32.totalorder %s85, 0
      %s88 = sadd.s32 %s87, 1
      %s89 = scalar_select %p86, %s87, %s88
      %p92 = pneg %p86
      %p93 = scmp.eq.s32.totalorder %s14, 1
      %p94 = por %p92, %p93
      %p95 = scmp.ne.s32.totalorder %s87, %s90
      %p96 = scmp.eq.s32.totalorder %s14, 0
      %p97 = por %p95, %p96
      %p98 = scmp.ne.s32.totalorder %s87, %s90
      %p99 = scmp.eq.s32.totalorder %s19, 1
      %p100 = por %p98, %p99
      %p101 = scmp.ne.s32.totalorder %s90, %s91
      %p102 = scmp.eq.s32.totalorder %s19, 0
      %p103 = por %p101, %p102
      %p104 = scmp.ne.s32.totalorder %s90, %s91
      %p105 = scmp.eq.s32.totalorder %s20, 1
      %p106 = por %p104, %p105
      %p108 = scmp.ne.s32.totalorder %s91, %s107
      %p109 = scmp.eq.s32.totalorder %s20, 0
      %p110 = por %p108, %p109
      %s111 = ssub.s32 %s14, %s21
      %p112 = scmp.eq.s32.totalorder %s111, 0
      %s114 = sadd.s32 %s113, 1
      %s115 = scalar_select %p112, %s113, %s114
      %p118 = pneg %p112
      %p119 = scmp.eq.s32.totalorder %s14, 1
      %p120 = por %p118, %p119
      %p121 = scmp.ne.s32.totalorder %s113, %s116
      %p122 = scmp.eq.s32.totalorder %s14, 0
      %p123 = por %p121, %p122
      %p124 = scmp.ne.s32.totalorder %s113, %s116
      %p125 = scmp.eq.s32.totalorder %s19, 1
      %p126 = por %p124, %p125
      %p127 = scmp.ne.s32.totalorder %s116, %s117
      %p128 = scmp.eq.s32.totalorder %s19, 0
      %p129 = por %p127, %p128
      %p130 = scmp.ne.s32.totalorder %s116, %s117
      %p131 = scmp.eq.s32.totalorder %s20, 1
      %p132 = por %p130, %p131
      %p134 = scmp.ne.s32.totalorder %s117, %s133
      %p135 = scmp.eq.s32.totalorder %s20, 0
      %p136 = por %p134, %p135
      %p137 = scmp.le.s32.totalorder 1, %s14
      %p138 = scmp.lt.s32.totalorder %s14, 3
      %p139 = pnand %p137, %p138
      %p140 = pneg %p139
      // Predicated region
      $region9: #{tpu_custom_call.1} parent=5 // pred_check
        _
      $region10: #{tpu_custom_call.1} parent=5 // pred_check_branch
        %142 = sbr.rel (%p139) target = $region12
      $region11: #{tpu_custom_call.1} parent=5 // pred_region
        %s143 = ssub.s32 %s14, 1
        // Predicated region
        $region13: #{tpu_custom_call.1} parent=11 // pred_check
          %p144 = pneg %p35
        $region14: #{tpu_custom_call.1} parent=11 // pred_check_branch
          %146 = sbr.rel (%p144) target = $region16
        $region15: #{tpu_custom_call.1} parent=11 // pred_region
          _
        $region16: #{tpu_custom_call.1} parent=11 // pred_fallthru
          _
        // Predicated region
        $region17: #{tpu_custom_call.1} parent=11 // pred_check
          %p147 = pneg %p56
        $region18: #{tpu_custom_call.1} parent=11 // pred_check_branch
          %149 = sbr.rel (%p147) target = $region20
        $region19: #{tpu_custom_call.1} parent=11 // pred_region
          _
        $region20: #{tpu_custom_call.1} parent=11 // pred_fallthru
          _
        // Predicated region
        $region21: #{tpu_custom_call.1} parent=11 // pred_check
          %p150 = pneg %p77
        $region22: #{tpu_custom_call.1} parent=11 // pred_check_branch
          %152 = sbr.rel (%p150) target = $region24
        $region23: #{tpu_custom_call.1} parent=11 // pred_region
          _
        $region24: #{tpu_custom_call.1} parent=11 // pred_fallthru
          _
      $region12: #{tpu_custom_call.1} parent=5 // pred_fallthru
        _
      %p153 = scmp.lt.s32.totalorder %s14, 2
      // Predicated region
      $region25: #{tpu_custom_call.1} parent=5 // pred_check
        %p154 = pneg %p153
      $region26: #{tpu_custom_call.1} parent=5 // pred_check_branch
        %156 = sbr.rel (%p154) target = $region28
      $region27: #{tpu_custom_call.1} parent=5 // pred_region
        // Predicated region
        $region29: #{tpu_custom_call.1} parent=27 // pred_check
          %p157 = pneg %p97
        $region30: #{tpu_custom_call.1} parent=27 // pred_check_branch
          %159 = sbr.rel (%p157) target = $region32
        $region31: #{tpu_custom_call.1} parent=27 // pred_region
          %s160 = sand.u32 %s87, 1
          %s161 = sand.u32 %s87, 1
          %s162 = smul.addr %s161, 32
          %s163 = scalar_lea.vmem [#allocation3], %s162
          %s164 = smul.addr %s14, 8
          %s165 = scalar_lea.vmem %s3, %s164
          // Predicated region
          $region33: #{tpu_custom_call.1} parent=31 // pred_check
            _
          $region34: #{tpu_custom_call.1} parent=31 // pred_check_branch
            %167 = sbr.rel (0) target = $region36
          $region35: #{tpu_custom_call.1} parent=31 // pred_region
            // Predicated region
            $region37: #{tpu_custom_call.1} parent=35 // pred_check
              _
            $region38: #{tpu_custom_call.1} parent=35 // pred_check_branch
              %169 = sbr.rel (0) target = $region40
            $region39: #{tpu_custom_call.1} parent=35 // pred_region
              // Predicated region
              $region52: #{tpu_custom_call.1} parent=39 // pred_check
                _
              $region53: #{tpu_custom_call.1} parent=39 // pred_check_branch
                %190 = sbr.rel (0) target = $region55
              $region54: #{tpu_custom_call.1} parent=39 // pred_region
                loop: start=0, step=1, limit=1
                $region56: #{tpu_custom_call.1} parent=54 // loop_pre_header
                  _
                $region57: #{tpu_custom_call.1} parent=54 // loop_header
                  %s192 = sphi 0, %s196
                  %p193 = scmp.ge.s32.totalorder %s192, 1
                  %s197 = sphi %s165, %s165
                  %s198 = sphi %s163, %s163
                $region58: #{tpu_custom_call.1} parent=54 // loop_header_branch
                  %195 = sbr.rel (%p193) target = $region62
                $region59: #{tpu_custom_call.1} parent=54 // loop_body
                  %v199 = vld [vmem:[%s197] sm:$0xff]
                  %200 = vst [vmem:[%s198] sm:$0xff] %v199
                  %v201 = vld [vmem:[%s197 + $0x10] sm:$0xff]
                  %202 = vst [vmem:[%s198 + $0x8] sm:$0xff] %v201
                  %v203 = vld [vmem:[%s197 + $0x20] sm:$0xff]
                  %204 = vst [vmem:[%s198 + $0x10] sm:$0xff] %v203
                  %v205 = vld [vmem:[%s197 + $0x30] sm:$0xff]
                  %206 = vst [vmem:[%s198 + $0x18] sm:$0xff] %v205
                $region60: #{tpu_custom_call.1} parent=54 // loop_footer
                  %s196 = sadd.s32 1, %s192
                $region61: #{tpu_custom_call.1} parent=54 // loop_footer_branch
                  %191 = sbr.rel target = $region57
                $region62: #{tpu_custom_call.1} parent=54 // loop_exit
                  _
              $region55: #{tpu_custom_call.1} parent=39 // pred_fallthru
                _
              // Predicated region
              $region63: #{tpu_custom_call.1} parent=39 // pred_check
                _
              $region64: #{tpu_custom_call.1} parent=39 // pred_check_branch
                %208 = sbr.rel target = $region66
              $region65: #{tpu_custom_call.1} parent=39 // pred_region
                _
              $region66: #{tpu_custom_call.1} parent=39 // pred_fallthru
                _
            $region40: #{tpu_custom_call.1} parent=35 // pred_fallthru
              _
            // Predicated region
            $region41: #{tpu_custom_call.1} parent=35 // pred_check
              _
            $region42: #{tpu_custom_call.1} parent=35 // pred_check_branch
              %171 = sbr.rel target = $region44
            $region43: #{tpu_custom_call.1} parent=35 // pred_region
              loop: start=0, step=1, limit=1
              $region45: #{tpu_custom_call.1} parent=43 // loop_pre_header
                _
              $region46: #{tpu_custom_call.1} parent=43 // loop_header
                %s174 = sphi 0, %s178
                %p175 = scmp.ge.s32.totalorder %s174, 1
                %s179 = sphi %s165, %s165
                %s180 = sphi %s163, %s163
              $region47: #{tpu_custom_call.1} parent=43 // loop_header_branch
                %177 = sbr.rel (%p175) target = $region51
              $region48: #{tpu_custom_call.1} parent=43 // loop_body
                %v181 = vld [vmem:[%s179] sm:$0xff]
                %182 = vst [vmem:[%s180] sm:$0xff] %v181
                %v183 = vld [vmem:[%s179 + $0x10] sm:$0xff]
                %184 = vst [vmem:[%s180 + $0x8] sm:$0xff] %v183
                %v185 = vld [vmem:[%s179 + $0x20] sm:$0xff]
                %186 = vst [vmem:[%s180 + $0x10] sm:$0xff] %v185
                %v187 = vld [vmem:[%s179 + $0x30] sm:$0xff]
                %188 = vst [vmem:[%s180 + $0x18] sm:$0xff] %v187
              $region49: #{tpu_custom_call.1} parent=43 // loop_footer
                %s178 = sadd.s32 1, %s174
              $region50: #{tpu_custom_call.1} parent=43 // loop_footer_branch
                %173 = sbr.rel target = $region46
              $region51: #{tpu_custom_call.1} parent=43 // loop_exit
                _
            $region44: #{tpu_custom_call.1} parent=35 // pred_fallthru
              _
          $region36: #{tpu_custom_call.1} parent=31 // pred_fallthru
            _
          %209 = vnop
        $region32: #{tpu_custom_call.1} parent=27 // pred_fallthru
          _
      $region28: #{tpu_custom_call.1} parent=5 // pred_fallthru
        _
      %p210 = scmp.le.s32.totalorder 1, %s14
      %p211 = scmp.lt.s32.totalorder %s14, 3
      %p212 = pnand %p210, %p211
      %p213 = pneg %p212
      // Predicated region
      $region67: #{tpu_custom_call.1} parent=5 // pred_check
        _
      $region68: #{tpu_custom_call.1} parent=5 // pred_check_branch
        %215 = sbr.rel (%p212) target = $region70
      $region69: #{tpu_custom_call.1} parent=5 // pred_region
        %s216 = ssub.s32 %s14, 1
        %s217 = sand.u32 %s90, 1
        %s218 = sand.u32 %s90, 1
        %s219 = smul.addr %s218, 32
        %s220 = scalar_lea.vmem [#allocation3], %s219
        // Predicated region
        $region71: #{tpu_custom_call.1} parent=69 // pred_check
          %p221 = pneg %p103
        $region72: #{tpu_custom_call.1} parent=69 // pred_check_branch
          %223 = sbr.rel (%p221) target = $region74
        $region73: #{tpu_custom_call.1} parent=69 // pred_region
          _
        $region74: #{tpu_custom_call.1} parent=69 // pred_fallthru
          _
        %p224 = pneg %p35
        %p225 = pneg %p32
        %p226 = pneg %p56
        %p227 = pneg %p53
        %p228 = pneg %p77
        %p229 = pneg %p74
        %s230 = sand.u32 %s90, 1
        %s231 = sand.u32 %s90, 1
        %s232 = smul.addr %s231, 32
        %s233 = scalar_lea.vmem [#allocation3], %s232
        %p234 = pneg %p103
        %p235 = pneg %p100
        %p236 = pneg %p129
        %p237 = pneg %p126
        %s238 = sand.u32 %s116, 1
        %s239 = scalar_lea.sflag [#allocation5], %s238
        %s240 = sand.u32 %s116, 1
        %s241 = smul.addr %s240, 32
        %s242 = scalar_lea.vmem [#allocation4], %s241
        %s244 = sld [smem:[#allocation2]]
        %v245 = vstv %s244
        %v246 = vrcp.pop %v245
        %s247 = vtos %v246
        %v248 = vld [vmem:[%s1] sm:$0xff]
        %v249 = vld [vmem:[%s1 + $0x8] sm:$0xff]
        %v250 = vld [vmem:[%s1 + $0x10] sm:$0xff]
        %v251 = vld [vmem:[%s1 + $0x18] sm:$0xff]
        %v252 = vstv %s247
        %v253 = vmul.f32 %v248, %v252
        %v254 = vmul.f32 %v249, %v252
        %v255 = vmul.f32 %v250, %v252
        %v256 = vmul.f32 %v251, %v252
        %v257 = vld [vmem:[%s2] sm:$0xff]
        %v258 = vld [vmem:[%s2 + $0x8] sm:$0xff]
        %v259 = vld [vmem:[%s2 + $0x10] sm:$0xff]
        %v260 = vld [vmem:[%s2 + $0x18] sm:$0xff]
        %vm261 = vcmask 130048
        %v263 = vsel %vm261, %v253, 0
        %v266 = vsel %vm261, %v254, 0
        %v269 = vsel %vm261, %v255, 0
        %v272 = vsel %vm261, %v256, 0
        %v275 = vsel %vm261, %v257, 0
        %v278 = vsel %vm261, %v258, 0
        %v281 = vsel %vm261, %v259, 0
        %v284 = vsel %vm261, %v260, 0
        %286 = vmatprep.subr.mxu0 0.0
        %287 = vmatpush1.xpose.msra.mxu0 %v275
        %288 = vmatprep.subr.mxu0 0.0
        %289 = vmatpush1.xpose.msra.mxu0 %v278
        %290 = vmatprep.subr.mxu0 0.0
        %291 = vmatpush1.xpose.msra.mxu0 %v281
        %292 = vmatprep.subr.mxu0 0.0
        %293 = vmatpush1.xpose.msra.mxu0 %v284
        %294 = vmatprep.subr.mxu0 0.0
        %295 = vmatpush1.xpose.msra.mxu0 0.0
        %296 = vmatprep.subr.mxu0 0.0
        %297 = vmatpush1.xpose.msra.mxu0 0.0
        %298 = vmatprep.subr.mxu0 0.0
        %299 = vmatpush1.xpose.msra.mxu0 0.0
        %300 = vmatprep.subr.mxu0 0.0
        %301 = vmatpush1.xpose.msra.mxu0 0.0
        %302 = vmatprep.subr.mxu0 0.0
        %303 = vmatpush1.xpose.msra.mxu0 0.0
        %304 = vmatprep.subr.mxu0 0.0
        %305 = vmatpush1.xpose.msra.mxu0 0.0
        %306 = vmatprep.subr.mxu0 0.0
        %307 = vmatpush1.xpose.msra.mxu0 0.0
        %308 = vmatprep.subr.mxu0 0.0
        %309 = vmatpush1.xpose.msra.mxu0 0.0
        %310 = vmatprep.subr.mxu0 0.0
        %311 = vmatpush1.xpose.msra.mxu0 0.0
        %312 = vmatprep.subr.mxu0 0.0
        %313 = vmatpush1.xpose.msra.mxu0 0.0
        %314 = vmatprep.subr.mxu0 0.0
        %315 = vmatpush1.xpose.msra.mxu0 0.0
        %316 = vmatprep.subr.mxu0 0.0
        %317 = vmatpush1.xpose.msra.mxu0 0.0
        %318 = vmatprep.subr.mxu0 0.0
        %319 = vmatpush1.xpose.msra.mxu0 0.0
        %320 = vmatprep.subr.mxu0 0.0
        %321 = vmatpush1.xpose.msra.mxu0 0.0
        %322 = vmatprep.subr.mxu0 0.0
        %323 = vmatpush1.xpose.msra.mxu0 0.0
        %324 = vmatprep.subr.mxu0 0.0
        %325 = vmatpush1.xpose.msra.mxu0 0.0
        %326 = vmatprep.subr.mxu0 0.0
        %327 = vmatpush1.xpose.msra.mxu0 0.0
        %328 = vmatprep.subr.mxu0 0.0
        %329 = vmatpush1.xpose.msra.mxu0 0.0
        %330 = vmatprep.subr.mxu0 0.0
        %331 = vmatpush1.xpose.msra.mxu0 0.0
        %332 = vmatprep.subr.mxu0 0.0
        %333 = vmatpush1.xpose.msra.mxu0 0.0
        %334 = vmatprep.subr.mxu0 0.0
        %335 = vmatpush1.xpose.msra.mxu0 0.0
        %336 = vmatprep.subr.mxu0 0.0
        %337 = vmatpush1.xpose.msra.mxu0 0.0
        %338 = vmatprep.subr.mxu0 0.0
        %339 = vmatpush1.xpose.msra.mxu0 0.0
        %340 = vmatprep.subr.mxu0 0.0
        %341 = vmatpush1.xpose.msra.mxu0 0.0
        %342 = vmatprep.subr.mxu0 0.0
        %343 = vmatpush1.xpose.msra.mxu0 0.0
        %344 = vmatprep.subr.mxu0 0.0
        %345 = vmatpush1.xpose.msra.mxu0 0.0
        %346 = vmatprep.subr.mxu0 0.0
        %347 = vmatpush1.xpose.msra.mxu0 0.0
        %348 = vmatprep.subr.mxu0 0.0
        %349 = vmatpush1.xpose.msra.mxu0 0.0
        %350 = vmatprep.mubr.f32.mxu0 0.0
        %351 = vmatmul.mubr.f32.gmra.mrb[0].mxu0 %v263
        %v352 = vpop.f32.mrb[0].mxu0
        %v353 = vadd.f32 0.0, %v352
        %v354 = vpop.f32.mrb[0].mxu0
        %355 = vmatprep.mubr.f32.mxu0 0.0
        %356 = vmatmul.mubr.f32.gmra.mrb[0].mxu0 %v266
        %v357 = vpop.f32.mrb[0].mxu0
        %v358 = vadd.f32 0.0, %v357
        %v359 = vpop.f32.mrb[0].mxu0
        %360 = vmatprep.mubr.f32.mxu0 0.0
        %361 = vmatmul.mubr.f32.gmra.mrb[0].mxu0 %v269
        %v362 = vpop.f32.mrb[0].mxu0
        %v363 = vadd.f32 0.0, %v362
        %v364 = vpop.f32.mrb[0].mxu0
        %365 = vmatprep.mubr.f32.mxu0 0.0
        %366 = vmatmul.mubr.f32.gmra.mrb[0].mxu0 %v272
        %v367 = vpop.f32.mrb[0].mxu0
        %v368 = vadd.f32 0.0, %v367
        %v369 = vpop.f32.mrb[0].mxu0
        %370 = vdwg.mxu0
        %vm371 = vcmask 261120
        %v372 = vsel %vm371, %v353, -inf
        %373 = vmax.xlane.f32.xlu0 %v372
        %v374 = vpop.xlane.xlu0 %373
        %v375 = vsel %vm371, %v358, -inf
        %376 = vmax.xlane.f32.xlu0 %v375
        %v377 = vpop.xlane.xlu0 %376
        %v378 = vsel %vm371, %v363, -inf
        %379 = vmax.xlane.f32.xlu0 %v378
        %v380 = vpop.xlane.xlu0 %379
        %v381 = vsel %vm371, %v368, -inf
        %382 = vmax.xlane.f32.xlu0 %v381
        %v383 = vpop.xlane.xlu0 %382
        %v384 = vsub.f32 %v353, %v374
        %v385 = vsub.f32 %v358, %v377
        %v386 = vsub.f32 %v363, %v380
        %v387 = vsub.f32 %v368, %v383
        %v388 = vmul.f32 %v384, 1.442695
        %v389 = vpow.pop %v388
        %v390 = vmul.f32 %v385, 1.442695
        %v391 = vpow.pop %v390
        %v392 = vmul.f32 %v386, 1.442695
        %v393 = vpow.pop %v392
        %v394 = vmul.f32 %v387, 1.442695
        %v395 = vpow.pop %v394
        %v396 = vsel %vm371, %v389, 0.0
        %397 = vadd.xlane.f32.xlu0 %v396
        %v398 = vpop.xlane.xlu0 %397
        %v399 = vsel %vm371, %v391, 0.0
        %400 = vadd.xlane.f32.xlu0 %v399
        %v401 = vpop.xlane.xlu0 %400
        %v402 = vsel %vm371, %v393, 0.0
        %403 = vadd.xlane.f32.xlu0 %v402
        %v404 = vpop.xlane.xlu0 %403
        %v405 = vsel %vm371, %v395, 0.0
        %406 = vadd.xlane.f32.xlu0 %v405
        %v407 = vpop.xlane.xlu0 %406
        %v408 = vrcp.pop %v398
        %v409 = vrcp.pop %v401
        %v410 = vrcp.pop %v404
        %v411 = vrcp.pop %v407
        %v412 = vmul.f32 %v389, %v408
        %v413 = vmul.f32 %v391, %v409
        %v414 = vmul.f32 %v393, %v410
        %v415 = vmul.f32 %v395, %v411
        %v416 = vpack.c.bf16 %v413, %v412
        %v417 = vpack.c.bf16 %v415, %v414
        %v418 = vld [vmem:[%s220] sm:$0xff]
        %v419 = vld [vmem:[%s220 + $0x8] sm:$0xff]
        %v420 = vld [vmem:[%s220 + $0x10] sm:$0xff]
        %v421 = vld [vmem:[%s220 + $0x18] sm:$0xff]
        %v422 = vpack.c.bf16 %v419, %v418
        %v423 = vpack.c.bf16 %v421, %v420
        %v425 = vsel %vm371, %v416, 0
        %v428 = vsel %vm371, %v417, 0
        %430 = vmatprep.subr.bf16.mxu0 0
        %431 = vmatpush1.bf16.msra.mxu0 %v422
        %432 = vmatprep.subr.bf16.mxu0 0
        %433 = vmatpush1.bf16.msra.mxu0 %v423
        %434 = vmatprep.subr.bf16.mxu0 0
        %435 = vmatpush1.bf16.msra.mxu0 0
        %436 = vmatprep.subr.bf16.mxu0 0
        %437 = vmatpush1.bf16.msra.mxu0 0
        %438 = vmatprep.subr.bf16.mxu0 0
        %439 = vmatpush1.bf16.msra.mxu0 0
        %440 = vmatprep.subr.bf16.mxu0 0
        %441 = vmatpush1.bf16.msra.mxu0 0
        %442 = vmatprep.subr.bf16.mxu0 0
        %443 = vmatpush1.bf16.msra.mxu0 0
        %444 = vmatprep.subr.bf16.mxu0 0
        %445 = vmatpush1.bf16.msra.mxu0 0
        %446 = vmatprep.subr.bf16.mxu0 0
        %447 = vmatpush1.bf16.msra.mxu0 0
        %448 = vmatprep.subr.bf16.mxu0 0
        %449 = vmatpush1.bf16.msra.mxu0 0
        %450 = vmatprep.subr.bf16.mxu0 0
        %451 = vmatpush1.bf16.msra.mxu0 0
        %452 = vmatprep.subr.bf16.mxu0 0
        %453 = vmatpush1.bf16.msra.mxu0 0
        %454 = vmatprep.subr.bf16.mxu0 0
        %455 = vmatpush1.bf16.msra.mxu0 0
        %456 = vmatprep.subr.bf16.mxu0 0
        %457 = vmatpush1.bf16.msra.mxu0 0
        %458 = vmatprep.subr.bf16.mxu0 0
        %459 = vmatpush1.bf16.msra.mxu0 0
        %460 = vmatprep.subr.bf16.mxu0 0
        %461 = vmatpush1.bf16.msra.mxu0 0
        %462 = vmatprep.mubr.bf16.mxu0 0
        %463 = vmatmul.mubr.bf16.gmra.mrb[0].mxu0 %v425
        %v464 = vpop.f32.mrb[0].mxu0
        %v465 = vadd.f32 0.0, %v464
        %v466 = vpop.f32.mrb[0].mxu0
        %v467 = vpop.f32.mrb[0].mxu0
        %v468 = vadd.f32 0.0, %v467
        %v469 = vpop.f32.mrb[0].mxu0
        %470 = vmatprep.mubr.bf16.mxu0 0
        %471 = vmatmul.mubr.bf16.gmra.mrb[0].mxu0 %v428
        %v472 = vpop.f32.mrb[0].mxu0
        %v473 = vadd.f32 0.0, %v472
        %v474 = vpop.f32.mrb[0].mxu0
        %v475 = vpop.f32.mrb[0].mxu0
        %v476 = vadd.f32 0.0, %v475
        %v477 = vpop.f32.mrb[0].mxu0
        %478 = vdwg.mxu0
        %479 = vst [vmem:[%s242] sm:$0xff] %v465
        %480 = vst [vmem:[%s242 + $0x8] sm:$0xff] %v468
        %481 = vst [vmem:[%s242 + $0x10] sm:$0xff] %v473
        %482 = vst [vmem:[%s242 + $0x18] sm:$0xff] %v476
        %s483 = sand.u32 %s116, 1
        %s484 = scalar_lea.sflag [#allocation5], %s483
        %s485 = sand.u32 %s116, 1
        %s486 = smul.addr %s485, 32
        %s487 = scalar_lea.vmem [#allocation4], %s486
        // Predicated region
        $region75: #{tpu_custom_call.1} parent=69 // pred_check
          %p488 = pneg %p126
        $region76: #{tpu_custom_call.1} parent=69 // pred_check_branch
          %490 = sbr.rel (%p488) target = $region78
        $region77: #{tpu_custom_call.1} parent=69 // pred_region
          %s492 = ssub.s32 512, 512
          %493 = vsyncadd %s484, %s492
          %s494 = smul.addr %s19, 128
          %s495 = scalar_lea.hbm %s4, %s494
          %s496 = sshll.u32 %s487, 4
          %s497 = int_to_ptr.vmem [resolvable:$true] %s496
          %502 = dma.vmem_to_hbm [thread:$0]  %s497, 512, %s495, %s484, 128, 256, 8
        $region78: #{tpu_custom_call.1} parent=69 // pred_fallthru
          _
      $region70: #{tpu_custom_call.1} parent=5 // pred_fallthru
        _
      %p503 = scmp.le.s32.totalorder 2, %s14
      // Predicated region
      $region79: #{tpu_custom_call.1} parent=5 // pred_check
        %p504 = pneg %p503
      $region80: #{tpu_custom_call.1} parent=5 // pred_check_branch
        %506 = sbr.rel (%p504) target = $region82
      $region81: #{tpu_custom_call.1} parent=5 // pred_region
        %s507 = ssub.s32 %s14, 2
        // Predicated region
        $region83: #{tpu_custom_call.1} parent=81 // pred_check
          %p508 = pneg %p132
        $region84: #{tpu_custom_call.1} parent=81 // pred_check_branch
          %510 = sbr.rel (%p508) target = $region86
        $region85: #{tpu_custom_call.1} parent=81 // pred_region
          %s511 = sand.u32 %s117, 1
          %s512 = scalar_lea.sflag [#allocation5], %s511
          %s513 = sand.u32 %s117, 1
          %s514 = smul.addr %s513, 32
          %s515 = scalar_lea.vmem [#allocation4], %s514
          %516 = dma.done %s512, 512
        $region86: #{tpu_custom_call.1} parent=81 // pred_fallthru
          _
      $region82: #{tpu_custom_call.1} parent=5 // pred_fallthru
        _
    $region6: #{tpu_custom_call.1} parent=1 // loop_footer
      %s18 = sadd.s32 1, %s14
    $region7: #{tpu_custom_call.1} parent=1 // loop_footer_branch
      %13 = sbr.rel target = $region3
    $region8: #{tpu_custom_call.1} parent=1 // loop_exit
      _
    %517 = vsyncpa [#allocation5], 1
    %s518 = scalar_lea.sflag [#allocation5], 1
    %519 = vsyncpa %s518, 1

</llo_original>
